<compile_context>
chip_gen: v5e
topology: v5e:2x2
jax: 0.10.0
libtpu: 0.0.40
codegen_flags: <defaults>
</compile_context>

<pallas_src>
import functools

import numpy as np
import jax
import jax.numpy as jnp
from jax.experimental import pallas as pl
from jax.experimental.pallas import tpu as pltpu


def _round_up(x, m):
    return ((x + m - 1) // m) * m


def _cdiv(a, b):
    return -(-a // b)


def _critic_kernel(sa_ref, wf_ref, b1_ref, w2x_ref, b2_ref, w3_ref, b3_ref,
                   o_ref, *, h1, matmul_dtype):
    sa = sa_ref[...]                                   # (tb, sd+ad)

    # Fused layer 1 + action-half of layer 2:
    #   u = [state, action] @ blockdiag(W1, W2a)  ->  (tb, h1+h2)       (MXU)
    u = jnp.dot(sa, wf_ref[...], preferred_element_type=jnp.float32)

    # layer 1 activation: relu on the first h1 columns only.
    x = jnp.maximum(u[:, :h1] + b1_ref[...], 0.0)      # (tb, h1), f32
    a_contrib = u[:, h1:]                               # action @ W2a, (tb, h2), f32

    # layer 2: relu(x @ W2x + action @ W2a + b2)                        (MXU)
    if matmul_dtype != jnp.float32:
        x = x.astype(matmul_dtype)
    y = jnp.dot(x, w2x_ref[...], preferred_element_type=jnp.float32)
    y = jnp.maximum(y + a_contrib + b2_ref[...], 0.0)   # (tb, h2), f32

    # layer 3: q = y @ w3 + b3 with out_features == 1, computed as
    #   w3_row (1,h2) x y^T (h2,tb)  ->  (1, tb)   (batch on lanes: lane-dense store)
    q = jax.lax.dot_general(w3_ref[...], y, (((1,), (1,)), ((), ())),
                            preferred_element_type=jnp.float32)
    o_ref[...] = (q + b3_ref[0, 0]).reshape(o_ref.shape)


def critic_forward(state, action, kparams, *, block_b=2048,
                   matmul_dtype=jnp.float32):
    """Critic forward pass as a single batch-tiled Pallas kernel. Returns (B, 1)."""
    wf, b1, w2x, b2, w3_row, b3 = kparams
    B = state.shape[0]
    sa_dim = wf.shape[0]                       # state_dim + action_dim
    h1, h2 = w2x.shape
    assert state.shape[1] + action.shape[1] == sa_dim

    # Single merged input stream (one DMA per grid step instead of two).
    sa = jnp.concatenate([state, action], axis=1)
    if matmul_dtype != jnp.float32:
        # Downcast at the HBM boundary so the dominant input stream is halved.
        sa = sa.astype(matmul_dtype)
        wf = wf.astype(matmul_dtype)
        w2x = w2x.astype(matmul_dtype)

    # --- batch tiling -------------------------------------------------------
    # Big tiles amortize the ~0.35 us per-grid-step pipeline overhead; if the
    # whole (large) batch would fit in one tile, split it into 2 so the
    # "parallel" grid axis can be sharded across both TensorCores on v7x.
    b8 = _round_up(B, 8)
    num_tiles = max(1, _cdiv(b8, block_b))
    if num_tiles == 1 and b8 >= 1024:
        num_tiles = 2
    tb = _round_up(_cdiv(b8, num_tiles), 8)
    b_pad = num_tiles * tb
    if b_pad != B:
        sa = jnp.pad(sa, ((0, b_pad - B), (0, 0)))

    def resident(shape):
        # Constant block index -> stays resident in VMEM across grid steps.
        return pl.BlockSpec(shape, lambda i: (0, 0))

    out = pl.pallas_call(
        functools.partial(_critic_kernel, h1=h1, matmul_dtype=matmul_dtype),
        # (num_tiles, 1, tb): batch sits on the lane axis -> lane-dense writeback.
        out_shape=jax.ShapeDtypeStruct((num_tiles, 1, tb), jnp.float32),
        grid=(num_tiles,),
        in_specs=[
            pl.BlockSpec((tb, sa_dim), lambda i: (i, 0)),           # [state|action]
            resident((sa_dim, h1 + h2)),                            # blockdiag(W1, W2a)
            resident((1, h1)),                                      # b1
            resident((h1, h2)),                                     # W2 (x part)
            resident((1, h2)),                                      # b2
            resident((1, h2)),                                      # W3 row
            pl.BlockSpec(memory_space=pltpu.MemorySpace.SMEM),      # b3 scalar
        ],
        out_specs=pl.BlockSpec((1, 1, tb), lambda i: (i, 0, 0)),
        compiler_params=pltpu.CompilerParams(
            dimension_semantics=("parallel",),   # shard batch tiles across TCs (v7x)
        ),
    )(sa, wf, b1, w2x, b2, w3_row, b3)
    return out.reshape(b_pad, 1)[:B]


def init_critic_params(key, state_dim, action_dim, h1=64, h2=32, init_w=0.003):
    """Deterministic init mirroring the PyTorch Critic.__init__ (math layout)."""
    ks = jax.random.split(key, 6)

    def uniform(k, shape, bound):
        return jax.random.uniform(k, shape, jnp.float32, -bound, bound)

    # fanin_ uses size[0] of the PyTorch weight (= out_features) as fan_in.
    w1 = uniform(ks[0], (state_dim, h1), 1.0 / np.sqrt(h1))
    b1 = uniform(ks[1], (1, h1), 1.0 / np.sqrt(state_dim))
    w2 = uniform(ks[2], (h1 + action_dim, h2), 1.0 / np.sqrt(h2))
    b2 = uniform(ks[3], (1, h2), 1.0 / np.sqrt(h1 + action_dim))
    w3 = uniform(ks[4], (h2, 1), init_w)
    b3 = uniform(ks[5], (1, 1), 1.0 / np.sqrt(h2))
    return (w1, b1, w2, b2, w3, b3)


def prepare_kernel_params(params):
    """Fold the math-layout params into the kernel layout (done once)."""
    w1, b1, w2, b2, w3, b3 = params
    state_dim, h1 = w1.shape
    k2, h2 = w2.shape
    action_dim = k2 - h1
    w2x, w2a = w2[:h1, :], w2[h1:, :]
    # Block-diagonal fused weight for layer 1 + the action half of layer 2.
    wf = jnp.zeros((state_dim + action_dim, h1 + h2), jnp.float32)
    wf = wf.at[:state_dim, :h1].set(w1)
    wf = wf.at[state_dim:, h1:].set(w2a)
    w3_row = w3.T                              # (1, h2)
    return (wf, b1, w2x, b2, w3_row, b3)


def critic_reference(state, action, params):
    """Pure-JAX reference matching the PyTorch forward exactly."""
    w1, b1, w2, b2, w3, b3 = params
    x = jnp.maximum(state @ w1 + b1, 0.0)
    x = jnp.maximum(jnp.concatenate([x, action], axis=1) @ w2 + b2, 0.0)
    return x @ w3 + b3


if __name__ == "__main__":
    state_dim, action_dim, h1, h2 = 16, 4, 64, 32
    key = jax.random.PRNGKey(0)
    k_p, k1, k2, k3 = jax.random.split(key, 4)
    params = init_critic_params(k_p, state_dim, action_dim, h1=h1, h2=h2)
    kparams = prepare_kernel_params(params)

    def run_case(k, batch, block_b):
        ks, ka = jax.random.split(k)
        s = jax.random.normal(ks, (batch, state_dim), jnp.float32)
        a = jax.random.normal(ka, (batch, action_dim), jnp.float32)
        q = jax.block_until_ready(critic_forward(s, a, kparams, block_b=block_b))
        q_ref = critic_reference(s, a, params)
        np.testing.assert_allclose(np.asarray(q), np.asarray(q_ref),
                                   rtol=1e-5, atol=1e-5)

    # Case 1: tiny batch -> single tile, all blocks equal full arrays.
    run_case(k1, 8, 2048)
    # Case 2: multi-tile grid + batch padding (B=70 -> tb=24, 3 tiles, 2 pad rows).
    run_case(k2, 70, 32)
    # Case 3: large single-tile batch auto-split into 2 tiles (v7x 2-TC path),
    #         exercising the big lane-dense output block.
    run_case(k3, 1024, 2048)

    print("KERNEL_OK")
</pallas_src>

<mosaic_0001>
module attributes {stable_mosaic.version = 11 : i64} {
  func.func @_critic_kernel(%arg0: i32, %arg1: memref<8x20xf32, #tpu.memory_space<vmem>>, %arg2: memref<20x96xf32, #tpu.memory_space<vmem>>, %arg3: memref<1x64xf32, #tpu.memory_space<vmem>>, %arg4: memref<64x32xf32, #tpu.memory_space<vmem>>, %arg5: memref<1x32xf32, #tpu.memory_space<vmem>>, %arg6: memref<1x32xf32, #tpu.memory_space<vmem>>, %arg7: memref<1x1xf32, #tpu.memory_space<smem>>, %arg8: memref<1x1x8xf32, #tpu.memory_space<vmem>>) attributes {dimension_semantics = [#tpu.dimension_semantics<parallel>], iteration_bounds = array<i64: 1>, scalar_prefetch = 0 : i64, scratch_operands = 0 : i64, tpu.core_type = #tpu.core_type<tc>, window_params = [{transform_indices = @transform_0, window_bounds = array<i64: 8, 20>}, {pipeline_mode = #tpu.pipeline_mode<synchronous>, transform_indices = @transform_1, window_bounds = array<i64: 20, 96>}, {pipeline_mode = #tpu.pipeline_mode<synchronous>, transform_indices = @transform_2, window_bounds = array<i64: 1, 64>}, {pipeline_mode = #tpu.pipeline_mode<synchronous>, transform_indices = @transform_3, window_bounds = array<i64: 64, 32>}, {pipeline_mode = #tpu.pipeline_mode<synchronous>, transform_indices = @transform_4, window_bounds = array<i64: 1, 32>}, {pipeline_mode = #tpu.pipeline_mode<synchronous>, transform_indices = @transform_5, window_bounds = array<i64: 1, 32>}, {transform_indices = @transform_6, window_bounds = array<i64: 1, 1>}, {transform_indices = @transform_7, window_bounds = array<i64: 1, 1, 8>}]} {
    %c0 = arith.constant 0 : index
    %c0_0 = arith.constant 0 : index
    %0 = vector.load %arg1[%c0, %c0_0] : memref<8x20xf32, #tpu.memory_space<vmem>>, vector<8x20xf32>
    %c0_1 = arith.constant 0 : index
    %c0_2 = arith.constant 0 : index
    %1 = vector.load %arg2[%c0_1, %c0_2] : memref<20x96xf32, #tpu.memory_space<vmem>>, vector<20x96xf32>
    %cst = arith.constant dense<0.000000e+00> : vector<8x96xf32>
    %2 = tpu.matmul %0, %1, %cst {dimension_numbers = #tpu.dot_dimension_numbers<[1], [0], [0], [1], [0, 0, 1, 1], [], []>} : vector<8x20xf32>, vector<20x96xf32>, vector<8x96xf32> -> vector<8x96xf32>
    %3 = vector.extract_strided_slice %2 {offsets = [0, 0], sizes = [8, 64], strides = [1, 1]} : vector<8x96xf32> to vector<8x64xf32>
    %c0_3 = arith.constant 0 : index
    %c0_4 = arith.constant 0 : index
    %4 = vector.load %arg3[%c0_3, %c0_4] : memref<1x64xf32, #tpu.memory_space<vmem>>, vector<1x64xf32>
    %5 = vector.broadcast %4 : vector<1x64xf32> to vector<8x64xf32>
    %6 = arith.addf %3, %5 : vector<8x64xf32>
    %cst_5 = arith.constant 0.000000e+00 : f32
    %7 = vector.broadcast %cst_5 : f32 to vector<8x64xf32>
    %8 = arith.maximumf %6, %7 : vector<8x64xf32>
    %9 = vector.extract_strided_slice %2 {offsets = [0, 64], sizes = [8, 32], strides = [1, 1]} : vector<8x96xf32> to vector<8x32xf32>
    %c0_6 = arith.constant 0 : index
    %c0_7 = arith.constant 0 : index
    %10 = vector.load %arg4[%c0_6, %c0_7] : memref<64x32xf32, #tpu.memory_space<vmem>>, vector<64x32xf32>
    %cst_8 = arith.constant dense<0.000000e+00> : vector<8x32xf32>
    %11 = tpu.matmul %8, %10, %cst_8 {dimension_numbers = #tpu.dot_dimension_numbers<[1], [0], [0], [1], [0, 0, 1, 1], [], []>} : vector<8x64xf32>, vector<64x32xf32>, vector<8x32xf32> -> vector<8x32xf32>
    %12 = arith.addf %11, %9 : vector<8x32xf32>
    %c0_9 = arith.constant 0 : index
    %c0_10 = arith.constant 0 : index
    %13 = vector.load %arg5[%c0_9, %c0_10] : memref<1x32xf32, #tpu.memory_space<vmem>>, vector<1x32xf32>
    %14 = vector.broadcast %13 : vector<1x32xf32> to vector<8x32xf32>
    %15 = arith.addf %12, %14 : vector<8x32xf32>
    %cst_11 = arith.constant 0.000000e+00 : f32
    %16 = vector.broadcast %cst_11 : f32 to vector<8x32xf32>
    %17 = arith.maximumf %15, %16 : vector<8x32xf32>
    %c0_12 = arith.constant 0 : index
    %c0_13 = arith.constant 0 : index
    %18 = vector.load %arg6[%c0_12, %c0_13] : memref<1x32xf32, #tpu.memory_space<vmem>>, vector<1x32xf32>
    %cst_14 = arith.constant dense<0.000000e+00> : vector<1x8xf32>
    %19 = tpu.matmul %18, %17, %cst_14 {dimension_numbers = #tpu.dot_dimension_numbers<[1], [1], [0], [0], [0, 0, 1, 0], [], []>} : vector<1x32xf32>, vector<8x32xf32>, vector<1x8xf32> -> vector<1x8xf32>
    %c0_15 = arith.constant 0 : index
    %c0_16 = arith.constant 0 : index
    %20 = memref.load %arg7[%c0_15, %c0_16] : memref<1x1xf32, #tpu.memory_space<smem>>
    %21 = vector.broadcast %20 : f32 to vector<1x8xf32>
    %22 = arith.addf %19, %21 : vector<1x8xf32>
    %23 = vector.shape_cast %22 : vector<1x8xf32> to vector<1x1x8xf32>
    %c0_17 = arith.constant 0 : index
    %c0_18 = arith.constant 0 : index
    %c0_19 = arith.constant 0 : index
    %24 = vector.load %arg8[%c0_17, %c0_18, %c0_19] : memref<1x1x8xf32, #tpu.memory_space<vmem>>, vector<1x1x8xf32>
    tpu.vector_store %arg8[%c0_17, %c0_18, %c0_19], %23 {strides = array<i32>} : memref<1x1x8xf32, #tpu.memory_space<vmem>>, vector<1x1x8xf32>,
    return
  }
  func.func @transform_0(%arg0: i32) -> (i32, i32) {
    %c0_i32 = arith.constant 0 : i32
    %c0_i32_0 = arith.constant 0 : i32
    return %arg0, %c0_i32 : i32, i32
  }
  func.func @transform_1(%arg0: i32) -> (i32, i32) {
    %c0_i32 = arith.constant 0 : i32
    %c0_i32_0 = arith.constant 0 : i32
    %c0_i32_1 = arith.constant 0 : i32
    return %c0_i32, %c0_i32_0 : i32, i32
  }
  func.func @transform_2(%arg0: i32) -> (i32, i32) {
    %c0_i32 = arith.constant 0 : i32
    %c0_i32_0 = arith.constant 0 : i32
    %c0_i32_1 = arith.constant 0 : i32
    return %c0_i32, %c0_i32_0 : i32, i32
  }
  func.func @transform_3(%arg0: i32) -> (i32, i32) {
    %c0_i32 = arith.constant 0 : i32
    %c0_i32_0 = arith.constant 0 : i32
    %c0_i32_1 = arith.constant 0 : i32
    return %c0_i32, %c0_i32_0 : i32, i32
  }
  func.func @transform_4(%arg0: i32) -> (i32, i32) {
    %c0_i32 = arith.constant 0 : i32
    %c0_i32_0 = arith.constant 0 : i32
    %c0_i32_1 = arith.constant 0 : i32
    return %c0_i32, %c0_i32_0 : i32, i32
  }
  func.func @transform_5(%arg0: i32) -> (i32, i32) {
    %c0_i32 = arith.constant 0 : i32
    %c0_i32_0 = arith.constant 0 : i32
    %c0_i32_1 = arith.constant 0 : i32
    return %c0_i32, %c0_i32_0 : i32, i32
  }
  func.func @transform_6(%arg0: i32) -> (i32, i32) {
    %c0_i32 = arith.constant 0 : i32
    %c0_i32_0 = arith.constant 0 : i32
    %c0_i32_1 = arith.constant 0 : i32
    return %c0_i32, %c0_i32_0 : i32, i32
  }
  func.func @transform_7(%arg0: i32) -> (i32, i32, i32) {
    %c0_i32 = arith.constant 0 : i32
    %c0_i32_0 = arith.constant 0 : i32
    %c0_i32_1 = arith.constant 0 : i32
    return %arg0, %c0_i32, %c0_i32_0 : i32, i32, i32
  }
}

</mosaic_0001>

<llo_original>
// kernel: tpu_custom_call.1
$region0: #{tpu_custom_call.1}
  #allocation0 [shape = 'u32[]', space=smem, size = 0x4, offset = 0x4, fixed_abs, tag = 'smem constant byte address 0x4 - core index']
  #allocation1 [shape = 'u32[72,128]{1,0:T(1,128)}', space=vmem, size = 0x9000, scoped, tag = 'internal scratch']
  #allocation2 [shape = 'f32[1,1]{1,0:T(1,128)S(6)}', space=smem, size = 0x200, scoped, tag = 'scoped memory for tpu_custom_call.1']
  %s0 = inlined_call_operand.vmem [shape: f32[8,20], index: 0, kind: input, shape index: {}]
  %s1 = inlined_call_operand.vmem [shape: f32[20,96], index: 1, kind: input, shape index: {}]
  %s2 = inlined_call_operand.vmem [shape: f32[1,64], index: 2, kind: input, shape index: {}]
  %s3 = inlined_call_operand.vmem [shape: f32[64,32], index: 3, kind: input, shape index: {}]
  %s4 = inlined_call_operand.vmem [shape: f32[1,32], index: 4, kind: input, shape index: {}]
  %s5 = inlined_call_operand.vmem [shape: f32[1,32], index: 5, kind: input, shape index: {}]
  %s6 = inlined_call_operand.<no memory space> [shape: f32[1,1], index: 6, kind: input, shape index: {}]
  %s7 = inlined_call_operand.hbm [shape: f32[1,1,8], index: 7, kind: output, shape index: {}]
  %s8 = sld [smem:[#allocation0]]
  $region38: #{tpu_custom_call.1} parent=0
    _
  %s10 = ssub.s32 1, %s8
  %s11 = scalar_select 0, %s10, %s8
  %12 = sst [smem:[#allocation2]] %s6
  $region1: #{tpu_custom_call.1} parent=0
    #allocation3 [shape = 'u8[512]{0}', space=vmem, size = 0x400, scoped, tag = 'output window, operand 0, single buffered']
    #allocation4 [shape = 's32[1]{0}', space=sflag, size = 0x4, scoped, tag = 'scoped memory for tpu_custom_call.1']
    %13 = vsyncpa [#allocation4], 0
    // Predicated region
    $region2: #{tpu_custom_call.1} parent=1 // pred_check
      _
    $region3: #{tpu_custom_call.1} parent=1 // pred_check_branch
      %15 = sbr.rel (0) target = $region5
    $region4: #{tpu_custom_call.1} parent=1 // pred_region
      _
    $region5: #{tpu_custom_call.1} parent=1 // pred_fallthru
      _
    // Predicated region
    $region6: #{tpu_custom_call.1} parent=1 // pred_check
      _
    $region7: #{tpu_custom_call.1} parent=1 // pred_check_branch
      %17 = sbr.rel (0) target = $region9
    $region8: #{tpu_custom_call.1} parent=1 // pred_region
      _
    $region9: #{tpu_custom_call.1} parent=1 // pred_fallthru
      _
    // Predicated region
    $region10: #{tpu_custom_call.1} parent=1 // pred_check
      _
    $region11: #{tpu_custom_call.1} parent=1 // pred_check_branch
      %19 = sbr.rel (0) target = $region13
    $region12: #{tpu_custom_call.1} parent=1 // pred_region
      _
    $region13: #{tpu_custom_call.1} parent=1 // pred_fallthru
      _
    // Predicated region
    $region14: #{tpu_custom_call.1} parent=1 // pred_check
      _
    $region15: #{tpu_custom_call.1} parent=1 // pred_check_branch
      %21 = sbr.rel (0) target = $region17
    $region16: #{tpu_custom_call.1} parent=1 // pred_region
      _
    $region17: #{tpu_custom_call.1} parent=1 // pred_fallthru
      _
    // Predicated region
    $region18: #{tpu_custom_call.1} parent=1 // pred_check
      _
    $region19: #{tpu_custom_call.1} parent=1 // pred_check_branch
      %23 = sbr.rel (0) target = $region21
    $region20: #{tpu_custom_call.1} parent=1 // pred_region
      _
    $region21: #{tpu_custom_call.1} parent=1 // pred_fallthru
      _
    // Predicated region
    $region22: #{tpu_custom_call.1} parent=1 // pred_check
      _
    $region23: #{tpu_custom_call.1} parent=1 // pred_check_branch
      %25 = sbr.rel (0) target = $region25
    $region24: #{tpu_custom_call.1} parent=1 // pred_region
      _
    $region25: #{tpu_custom_call.1} parent=1 // pred_fallthru
      _
    // Predicated region
    $region26: #{tpu_custom_call.1} parent=1 // pred_check
      _
    $region27: #{tpu_custom_call.1} parent=1 // pred_check_branch
      %27 = sbr.rel (0) target = $region29
    $region28: #{tpu_custom_call.1} parent=1 // pred_region
      _
    $region29: #{tpu_custom_call.1} parent=1 // pred_fallthru
      _
    %v28 = vld [vmem:[%s0] sm:$0xff]
    %v29 = vld [vmem:[%s1] sm:$0xff]
    %v30 = vld [vmem:[%s1 + $0x8] sm:$0xff]
    %v31 = vld [vmem:[%s1 + $0x10] sm:$0xf]
    %vm32 = vcmask 162816
    %v34 = vsel %vm32, %v28, 0
    %vm36 = vcmask 1043456
    %v38 = vsel %vm36, %v31, 0
    %40 = vmatpush.msra.mxu0 0.0
    %41 = vmatpush.msra.mxu0 0.0
    %42 = vmatpush.msra.mxu0 0.0
    %43 = vmatpush.msra.mxu0 0.0
    %44 = vmatpush.msra.mxu0 0.0
    %45 = vmatpush.msra.mxu0 0.0
    %46 = vmatpush.msra.mxu0 0.0
    %47 = vmatpush.msra.mxu0 0.0
    %48 = vmatpush.msra.mxu0 0.0
    %49 = vmatpush.msra.mxu0 0.0
    %50 = vmatpush.msra.mxu0 0.0
    %51 = vmatpush.msra.mxu0 0.0
    %52 = vmatpush.msra.mxu0 0.0
    %53 = vmatpush.msra.mxu0 %v38
    %54 = vmatpush.msra.mxu0 %v30
    %55 = vmatpush.msra.mxu0 %v29
    %56 = vmatmul.f32.gmra.mxu0 %v34
    %v57 = vpop.f32.mrf.mxu0
    %v58 = vadd.f32 0.0, %v57
    %59 = vdwg.mxu0
    %v60 = vld [vmem:[%s2] sm:$0x1]
    %v62 = vperm.slane %v60, 0
    %v64 = vadd.f32 %v58, %v62
    %v65 = vmax.f32 %v64, 0.0
    %v66 = vld [vmem:[%s3] sm:$0xff]
    %v67 = vld [vmem:[%s3 + $0x8] sm:$0xff]
    %v68 = vld [vmem:[%s3 + $0x10] sm:$0xff]
    %v69 = vld [vmem:[%s3 + $0x18] sm:$0xff]
    %v70 = vld [vmem:[%s3 + $0x20] sm:$0xff]
    %v71 = vld [vmem:[%s3 + $0x28] sm:$0xff]
    %v72 = vld [vmem:[%s3 + $0x30] sm:$0xff]
    %v73 = vld [vmem:[%s3 + $0x38] sm:$0xff]
    %75 = vrot.lane.b32.xlu0 %v58, 64
    %v76 = vpop.permute.xlu0 %75
    %vm78 = vcmask 523264
    %v80 = vsel %vm78, %v65, 0
    %82 = vmatpush.msra.mxu0 0.0
    %83 = vmatpush.msra.mxu0 0.0
    %84 = vmatpush.msra.mxu0 0.0
    %85 = vmatpush.msra.mxu0 0.0
    %86 = vmatpush.msra.mxu0 0.0
    %87 = vmatpush.msra.mxu0 0.0
    %88 = vmatpush.msra.mxu0 0.0
    %89 = vmatpush.msra.mxu0 0.0
    %90 = vmatpush.msra.mxu0 %v73
    %91 = vmatpush.msra.mxu0 %v72
    %92 = vmatpush.msra.mxu0 %v71
    %93 = vmatpush.msra.mxu0 %v70
    %94 = vmatpush.msra.mxu0 %v69
    %95 = vmatpush.msra.mxu0 %v68
    %96 = vmatpush.msra.mxu0 %v67
    %97 = vmatpush.msra.mxu0 %v66
    %98 = vmatmul.f32.gmra.mxu0 %v80
    %v99 = vpop.f32.mrf.mxu0
    %v100 = vadd.f32 %v76, %v99
    %101 = vdwg.mxu0
    %v102 = vld [vmem:[%s4] sm:$0x1]
    %v104 = vperm.slane %v102, 0
    %v106 = vadd.f32 %v100, %v104
    %v107 = vmax.f32 %v106, 0.0
    %v108 = vld [vmem:[%s5] sm:$0x1]
    %s109 = sld [smem:[#allocation2]]
    %v110 = vstv %s109
    %vm111 = vcmask 261120
    %v113 = vsel %vm111, %v108, 0
    %v116 = vsel %vm111, %v107, 0
    %118 = vmatpush.xpose.msra.mxu0 0.0
    %119 = vmatpush.xpose.msra.mxu0 0.0
    %120 = vmatpush.xpose.msra.mxu0 0.0
    %121 = vmatpush.xpose.msra.mxu0 0.0
    %122 = vmatpush.xpose.msra.mxu0 0.0
    %123 = vmatpush.xpose.msra.mxu0 0.0
    %124 = vmatpush.xpose.msra.mxu0 0.0
    %125 = vmatpush.xpose.msra.mxu0 0.0
    %126 = vmatpush.xpose.msra.mxu0 0.0
    %127 = vmatpush.xpose.msra.mxu0 0.0
    %128 = vmatpush.xpose.msra.mxu0 0.0
    %129 = vmatpush.xpose.msra.mxu0 0.0
    %130 = vmatpush.xpose.msra.mxu0 0.0
    %131 = vmatpush.xpose.msra.mxu0 0.0
    %132 = vmatpush.xpose.msra.mxu0 0.0
    %133 = vmatpush.xpose.msra.mxu0 %v116
    %134 = vmatmul.f32.gmra.mxu0 %v113
    %v135 = vpop.f32.mrf.mxu0
    %v136 = vadd.f32 %v110, %v135
    %137 = vdwg.mxu0
    %vm138 = vcmask 57344
    %139 = vst.msk [vmem:[#allocation3] sm:$0x1] %vm138, %v136
    // Predicated region
    $region30: #{tpu_custom_call.1} parent=1 // pred_check
      _
    $region31: #{tpu_custom_call.1} parent=1 // pred_check_branch
      %141 = sbr.rel (0) target = $region33
    $region32: #{tpu_custom_call.1} parent=1 // pred_region
      %143 = vsyncadd [#allocation4], 0
      %s145 = sshll.u32 [#allocation3], 4
      %s146 = int_to_ptr.vmem [resolvable:$true] %s145
      %s147 = sshll.u32 %s7, 4
      %s148 = int_to_ptr.hbm [resolvable:$true] %s147
      %150 = dma.vmem_to_hbm [thread:$0]  %s146, 16, %s148, [#allocation4]
    $region33: #{tpu_custom_call.1} parent=1 // pred_fallthru
      _
    // Predicated region
    $region34: #{tpu_custom_call.1} parent=1 // pred_check
      _
    $region35: #{tpu_custom_call.1} parent=1 // pred_check_branch
      %152 = sbr.rel (0) target = $region37
    $region36: #{tpu_custom_call.1} parent=1 // pred_region
      %154 = dma.done [#allocation4], 16
    $region37: #{tpu_custom_call.1} parent=1 // pred_fallthru
      _
    %155 = vsyncpa [#allocation4], 1

</llo_original>
